<compile_context>
chip_gen: v5e
topology: v5e:2x2
jax: 0.10.0
libtpu: 0.0.40
codegen_flags: <defaults>
</compile_context>

<pallas_src>
import functools

import jax
import jax.numpy as jnp
from jax.experimental import pallas as pl
from jax.experimental.pallas import tpu as pltpu


def _logreg_kernel(x_ref, w_ref, b_ref, o_ref):
    # z = x @ W + b ; out = sigmoid(z).  Cast x to f32 in-register (VPU slack).
    xb = x_ref[...].astype(jnp.float32)
    z = jnp.dot(xb, w_ref[...], preferred_element_type=jnp.float32)
    z = z + b_ref[...]                                  # (TB, n) + (1, n) broadcast
    # sigmoid(z) == 0.5 * tanh(0.5 * z) + 0.5  -> tanh runs on the EUP slot.
    o_ref[...] = (0.5 * jnp.tanh(0.5 * z) + 0.5).astype(o_ref.dtype)


def _round_up(a, b):
    return ((a + b - 1) // b) * b


@functools.partial(jax.jit, static_argnames=("block_rows",))
def logreg_phishing_forward(x, weight, bias, *, block_rows=4096):
    """x: any shape flattening to (-1, din); weight: (dout, din); bias: (dout,)."""
    dout, din = weight.shape
    x2d = x.reshape(-1, din)            # keep native dtype; cast inside the kernel
    B = x2d.shape[0]

    w_f32 = weight.astype(jnp.float32)
    b_f32 = bias.astype(jnp.float32)

    # ---- packed (lane-dense) path selection --------------------------------
    use_pack = (dout == 1) and (din <= 128)
    if use_pack:
        din_p = pl.next_power_of_2(max(din, 1))   # smallest divisor of 128 >= din
        P = 128 // din_p
        if din_p != din and P < 2:
            use_pack = False                      # feature padding would buy nothing

    if use_pack:
        if din_p != din:
            # Free for the (1, din) weight; for x this is one extra HBM pass.
            # TODO(synk): fold the feature zero-padding into upstream
            # preprocessing so the hot path never copies x.
            w_f32 = jnp.pad(w_f32, ((0, 0), (0, din_p - din)))
            x2d = jnp.pad(x2d, ((0, 0), (0, din_p - din)))
        # Block-diagonal replication of the single weight row:
        #   w_big[j*din_p + d, j] = weight[0, d],  shape (P*din_p, P) = (128, P)
        eye = jnp.eye(P, dtype=jnp.float32)
        w_big = (eye[:, None, :] * w_f32[0][None, :, None]).reshape(P * din_p, P)
        b_big = jnp.broadcast_to(b_f32.reshape(1, 1), (1, P))
        k_dim, n_dim = P * din_p, P               # = 128, P
        # Only the <= P-1 leftover samples get padded (tiny); the aligned common
        # case (B % P == 0) is a free row-major reshape with no data movement.
        rem = B % P
        if rem:
            x2d = jnp.pad(x2d, ((0, P - rem), (0, 0)))
        Bp = x2d.shape[0] // P
        xp = x2d.reshape(Bp, k_dim)
    else:
        w_big = w_f32.T                            # (din, dout)
        b_big = b_f32.reshape(1, dout)
        k_dim, n_dim = din, dout
        P = 1
        Bp = B
        xp = x2d

    # ---- row tiling ---------------------------------------------------------
    # Big tiles amortize the ~0.35us per-grid-step overhead; cap at 8192 rows so
    # two double-buffered f32 input tiles (~8 MiB) stay under v5e's 16 MiB
    # default scoped-VMEM limit.  Multiple of 32 keeps bf16/int8 inputs aligned.
    TB = _round_up(min(block_rows, 8192), 32)
    if Bp > 64 and Bp <= TB:
        # Prefer >= 2 grid steps so the "parallel" axis can split across v7x's
        # two TensorCores (harmless single-core elsewhere).
        TB = _round_up(pl.cdiv(Bp, 2), 32)
    if Bp <= TB:
        TB = Bp                                    # single full-array tile
    n_tiles = pl.cdiv(Bp, TB)                      # partial last tile is masked

    out = pl.pallas_call(
        _logreg_kernel,
        out_shape=jax.ShapeDtypeStruct((Bp, n_dim), jnp.float32),
        grid=(n_tiles,),
        in_specs=[
            pl.BlockSpec((TB, k_dim), lambda i: (i, 0)),      # activations: tiled
            pl.BlockSpec((k_dim, n_dim), lambda i: (0, 0)),   # weight: resident
            pl.BlockSpec((1, n_dim), lambda i: (0, 0)),       # bias: resident
        ],
        out_specs=pl.BlockSpec((TB, n_dim), lambda i: (i, 0)),
        compiler_params=pltpu.CompilerParams(
            dimension_semantics=("parallel",),
        ),
    )(xp, w_big, b_big)

    # Packed rows hold P consecutive samples (row-major), so a flat reshape
    # restores sample order; slice off the (at most P-1) tail-padding samples.
    return out.reshape(Bp * P, dout)[:B]


if __name__ == "__main__":
    key = jax.random.PRNGKey(0)
    kx, kw, kb, kx2, kx3, kw3, kb3, kx4 = jax.random.split(key, 8)

    din, dout = 32, 1
    bound = 1.0 / jnp.sqrt(jnp.float32(din))
    weight = jax.random.uniform(kw, (dout, din), jnp.float32, -bound, bound)
    bias = jax.random.uniform(kb, (dout,), jnp.float32, -bound, bound)

    def ref_fwd(xx, ww, bb):
        return jax.nn.sigmoid(xx.reshape(-1, ww.shape[1]) @ ww.T + bb)

    # 1) Aligned small batch (zero-copy packed path, single full-array tile).
    x = jax.random.normal(kx, (8, din), jnp.float32)
    out = jax.block_until_ready(logreg_phishing_forward(x, weight, bias))
    assert out.shape == (8, dout), out.shape
    assert jnp.allclose(out, ref_fwd(x, weight, bias), atol=1e-5)

    # 2) Batch not a multiple of the packing factor (tiny <=P-1 row tail pad).
    x2 = jax.random.normal(kx2, (10, din), jnp.float32)
    out2 = jax.block_until_ready(logreg_phishing_forward(x2, weight, bias))
    assert out2.shape == (10, dout), out2.shape
    assert jnp.allclose(out2, ref_fwd(x2, weight, bias), atol=1e-5)

    # 3) Realistic phishing feature count (din=30 -> padded to 32, P=4 packing).
    din3 = 30
    bound3 = 1.0 / jnp.sqrt(jnp.float32(din3))
    weight3 = jax.random.uniform(kw3, (1, din3), jnp.float32, -bound3, bound3)
    bias3 = jax.random.uniform(kb3, (1,), jnp.float32, -bound3, bound3)
    x3 = jax.random.normal(kx3, (6, din3), jnp.float32)
    out3 = jax.block_until_ready(logreg_phishing_forward(x3, weight3, bias3))
    assert out3.shape == (6, 1), out3.shape
    assert jnp.allclose(out3, ref_fwd(x3, weight3, bias3), atol=1e-5)

    # 4) Multi-step cdiv grid with a masked partial last tile (no batch padding).
    x4 = jax.random.normal(kx4, (1000, din), jnp.float32)
    out4 = jax.block_until_ready(logreg_phishing_forward(x4, weight, bias))
    assert out4.shape == (1000, dout), out4.shape
    assert jnp.allclose(out4, ref_fwd(x4, weight, bias), atol=1e-5)

    print("KERNEL_OK")
</pallas_src>

<mosaic_0001>
module attributes {stable_mosaic.version = 11 : i64} {
  func.func @_logreg_kernel(%arg0: i32, %arg1: memref<2x128xf32, #tpu.memory_space<vmem>>, %arg2: memref<128x4xf32, #tpu.memory_space<vmem>>, %arg3: memref<1x4xf32, #tpu.memory_space<vmem>>, %arg4: memref<2x4xf32, #tpu.memory_space<vmem>>) attributes {dimension_semantics = [#tpu.dimension_semantics<parallel>], iteration_bounds = array<i64: 1>, scalar_prefetch = 0 : i64, scratch_operands = 0 : i64, tpu.core_type = #tpu.core_type<tc>, window_params = [{transform_indices = @transform_0, window_bounds = array<i64: 2, 128>}, {pipeline_mode = #tpu.pipeline_mode<synchronous>, transform_indices = @transform_1, window_bounds = array<i64: 128, 4>}, {pipeline_mode = #tpu.pipeline_mode<synchronous>, transform_indices = @transform_2, window_bounds = array<i64: 1, 4>}, {transform_indices = @transform_3, window_bounds = array<i64: 2, 4>}]} {
    %c0 = arith.constant 0 : index
    %c0_0 = arith.constant 0 : index
    %0 = vector.load %arg1[%c0, %c0_0] : memref<2x128xf32, #tpu.memory_space<vmem>>, vector<2x128xf32>
    %c0_1 = arith.constant 0 : index
    %c0_2 = arith.constant 0 : index
    %1 = vector.load %arg2[%c0_1, %c0_2] : memref<128x4xf32, #tpu.memory_space<vmem>>, vector<128x4xf32>
    %cst = arith.constant dense<0.000000e+00> : vector<2x4xf32>
    %2 = tpu.matmul %0, %1, %cst {dimension_numbers = #tpu.dot_dimension_numbers<[1], [0], [0], [1], [0, 0, 1, 1], [], []>} : vector<2x128xf32>, vector<128x4xf32>, vector<2x4xf32> -> vector<2x4xf32>
    %c0_3 = arith.constant 0 : index
    %c0_4 = arith.constant 0 : index
    %3 = vector.load %arg3[%c0_3, %c0_4] : memref<1x4xf32, #tpu.memory_space<vmem>>, vector<1x4xf32>
    %4 = vector.broadcast %3 : vector<1x4xf32> to vector<2x4xf32>
    %5 = arith.addf %2, %4 : vector<2x4xf32>
    %cst_5 = arith.constant 5.000000e-01 : f32
    %6 = vector.broadcast %cst_5 : f32 to vector<2x4xf32>
    %7 = arith.mulf %6, %5 : vector<2x4xf32>
    %8 = math.tanh %7 : vector<2x4xf32>
    %cst_6 = arith.constant 5.000000e-01 : f32
    %9 = vector.broadcast %cst_6 : f32 to vector<2x4xf32>
    %10 = arith.mulf %9, %8 : vector<2x4xf32>
    %cst_7 = arith.constant 5.000000e-01 : f32
    %11 = vector.broadcast %cst_7 : f32 to vector<2x4xf32>
    %12 = arith.addf %10, %11 : vector<2x4xf32>
    %c0_8 = arith.constant 0 : index
    %c0_9 = arith.constant 0 : index
    %13 = vector.load %arg4[%c0_8, %c0_9] : memref<2x4xf32, #tpu.memory_space<vmem>>, vector<2x4xf32>
    tpu.vector_store %arg4[%c0_8, %c0_9], %12 {strides = array<i32>} : memref<2x4xf32, #tpu.memory_space<vmem>>, vector<2x4xf32>,
    return
  }
  func.func @transform_0(%arg0: i32) -> (i32, i32) {
    %c0_i32 = arith.constant 0 : i32
    %c0_i32_0 = arith.constant 0 : i32
    return %arg0, %c0_i32 : i32, i32
  }
  func.func @transform_1(%arg0: i32) -> (i32, i32) {
    %c0_i32 = arith.constant 0 : i32
    %c0_i32_0 = arith.constant 0 : i32
    %c0_i32_1 = arith.constant 0 : i32
    return %c0_i32, %c0_i32_0 : i32, i32
  }
  func.func @transform_2(%arg0: i32) -> (i32, i32) {
    %c0_i32 = arith.constant 0 : i32
    %c0_i32_0 = arith.constant 0 : i32
    %c0_i32_1 = arith.constant 0 : i32
    return %c0_i32, %c0_i32_0 : i32, i32
  }
  func.func @transform_3(%arg0: i32) -> (i32, i32) {
    %c0_i32 = arith.constant 0 : i32
    %c0_i32_0 = arith.constant 0 : i32
    return %arg0, %c0_i32 : i32, i32
  }
}

</mosaic_0001>

<llo_original>
// kernel: logreg_phishing_forward.1
$region0: #{logreg_phishing_forward.1}
  #allocation0 [shape = 'u32[]', space=smem, size = 0x4, offset = 0x4, fixed_abs, tag = 'smem constant byte address 0x4 - core index']
  #allocation1 [shape = 'u32[72,128]{1,0:T(1,128)}', space=vmem, size = 0x9000, scoped, tag = 'internal scratch']
  %s0 = inlined_call_operand.vmem [shape: f32[2,128], index: 0, kind: input, shape index: {}]
  %s1 = inlined_call_operand.vmem [shape: f32[128,4], index: 1, kind: input, shape index: {}]
  %s2 = inlined_call_operand.vmem [shape: f32[1,4], index: 2, kind: input, shape index: {}]
  %s3 = inlined_call_operand.vmem [shape: f32[2,4], index: 3, kind: output, shape index: {}]
  %s4 = sld [smem:[#allocation0]]
  $region22: #{logreg_phishing_forward.1} parent=0
    _
  %s6 = ssub.s32 1, %s4
  %s7 = scalar_select 0, %s6, %s4
  // Predicated region
  $region2: #{logreg_phishing_forward.1} parent=0 // pred_check
    _
  $region3: #{logreg_phishing_forward.1} parent=0 // pred_check_branch
    %9 = sbr.rel (0) target = $region5
  $region4: #{logreg_phishing_forward.1} parent=0 // pred_region
    _
  $region5: #{logreg_phishing_forward.1} parent=0 // pred_fallthru
    _
  // Predicated region
  $region6: #{logreg_phishing_forward.1} parent=0 // pred_check
    _
  $region7: #{logreg_phishing_forward.1} parent=0 // pred_check_branch
    %11 = sbr.rel (0) target = $region9
  $region8: #{logreg_phishing_forward.1} parent=0 // pred_region
    _
  $region9: #{logreg_phishing_forward.1} parent=0 // pred_fallthru
    _
  // Predicated region
  $region10: #{logreg_phishing_forward.1} parent=0 // pred_check
    _
  $region11: #{logreg_phishing_forward.1} parent=0 // pred_check_branch
    %13 = sbr.rel (0) target = $region13
  $region12: #{logreg_phishing_forward.1} parent=0 // pred_region
    _
  $region13: #{logreg_phishing_forward.1} parent=0 // pred_fallthru
    _
  %v14 = vld [vmem:[%s0] sm:$0x3]
  %v15 = vld [vmem:[%s1] sm:$0xff]
  %v16 = vld [vmem:[%s1 + $0x8] sm:$0xff]
  %v17 = vld [vmem:[%s1 + $0x10] sm:$0xff]
  %v18 = vld [vmem:[%s1 + $0x18] sm:$0xff]
  %v19 = vld [vmem:[%s1 + $0x20] sm:$0xff]
  %v20 = vld [vmem:[%s1 + $0x28] sm:$0xff]
  %v21 = vld [vmem:[%s1 + $0x30] sm:$0xff]
  %v22 = vld [vmem:[%s1 + $0x38] sm:$0xff]
  %v23 = vld [vmem:[%s1 + $0x40] sm:$0xff]
  %v24 = vld [vmem:[%s1 + $0x48] sm:$0xff]
  %v25 = vld [vmem:[%s1 + $0x50] sm:$0xff]
  %v26 = vld [vmem:[%s1 + $0x58] sm:$0xff]
  %v27 = vld [vmem:[%s1 + $0x60] sm:$0xff]
  %v28 = vld [vmem:[%s1 + $0x68] sm:$0xff]
  %v29 = vld [vmem:[%s1 + $0x70] sm:$0xff]
  %v30 = vld [vmem:[%s1 + $0x78] sm:$0xff]
  %v31 = vld [vmem:[%s2] sm:$0x1]
  %v33 = vperm.slane %v31, 0
  %35 = vmatpush.msra.mxu0 %v30
  %36 = vmatpush.msra.mxu0 %v29
  %37 = vmatpush.msra.mxu0 %v28
  %38 = vmatpush.msra.mxu0 %v27
  %39 = vmatpush.msra.mxu0 %v26
  %40 = vmatpush.msra.mxu0 %v25
  %41 = vmatpush.msra.mxu0 %v24
  %42 = vmatpush.msra.mxu0 %v23
  %43 = vmatpush.msra.mxu0 %v22
  %44 = vmatpush.msra.mxu0 %v21
  %45 = vmatpush.msra.mxu0 %v20
  %46 = vmatpush.msra.mxu0 %v19
  %47 = vmatpush.msra.mxu0 %v18
  %48 = vmatpush.msra.mxu0 %v17
  %49 = vmatpush.msra.mxu0 %v16
  %50 = vmatpush.msra.mxu0 %v15
  %51 = vmatmul.f32.gmra.mxu0 %v14
  %v52 = vpop.f32.mrf.mxu0
  %v53 = vadd.f32 %v33, %v52
  %54 = vdwg.mxu0
  %v55 = vmul.f32 %v53, 0.5
  %v56 = vtanh.pop %v55
  %v57 = vmul.f32 %v56, 0.5
  %v58 = vadd.f32 %v57, 0.5
  %vm59 = vcmask 25600
  %60 = vst.msk [vmem:[%s3] sm:$0x3] %vm59, %v58
  // Predicated region
  $region14: #{logreg_phishing_forward.1} parent=0 // pred_check
    _
  $region15: #{logreg_phishing_forward.1} parent=0 // pred_check_branch
    %62 = sbr.rel (0) target = $region17
  $region16: #{logreg_phishing_forward.1} parent=0 // pred_region
    _
  $region17: #{logreg_phishing_forward.1} parent=0 // pred_fallthru
    _
  // Predicated region
  $region18: #{logreg_phishing_forward.1} parent=0 // pred_check
    _
  $region19: #{logreg_phishing_forward.1} parent=0 // pred_check_branch
    %64 = sbr.rel (0) target = $region21
  $region20: #{logreg_phishing_forward.1} parent=0 // pred_region
    _
  $region21: #{logreg_phishing_forward.1} parent=0 // pred_fallthru
    _

</llo_original>
